<compile_context>
chip_gen: v7x
topology: tpu7x:2x2x1
jax: 0.10.0
libtpu: 0.0.40
codegen_flags: <defaults>
</compile_context>

<pallas_src>
import functools

import jax
import jax.numpy as jnp
from jax.experimental import pallas as pl
from jax.experimental.pallas import tpu as pltpu

_LANE = 128
_MIB = 1024 * 1024


def _round_up(n, m):
    return ((n + m - 1) // m) * m


# ---------------------------------------------------------------------------
# Generation-aware hardware queries (computed once, conservative fallbacks).
# ---------------------------------------------------------------------------
@functools.lru_cache(maxsize=None)
def _vmem_capacity_bytes():
    try:
        return int(pltpu.get_tpu_info().vmem_capacity_bytes)
    except Exception:
        return 128 * _MIB                      # v5e / v6e physical VMEM


@functools.lru_cache(maxsize=None)
def _vmem_budget_bytes():
    # ~80% of physical per-core VMEM: ~102 MiB on v5e/v6e, ~51 MiB on v7x.
    return max(32 * _MIB, int(_vmem_capacity_bytes() * 0.8))


@functools.lru_cache(maxsize=None)
def _num_tensorcores():
    # Heuristic: 64 MiB per-core VMEM => v7x-like chip with 2 TensorCores.
    return 2 if _vmem_capacity_bytes() <= 64 * _MIB else 1


@functools.lru_cache(maxsize=None)
def _single_buffer_ok():
    """Probe whether this build supports pl.Buffered(1) on a constant-index
    (grid-resident) input across a multi-step grid (the real usage pattern)."""
    def _probe(x_ref, w_ref, o_ref):
        o_ref[...] = x_ref[...] + w_ref[...]

    try:
        call = pl.pallas_call(
            _probe,
            out_shape=jax.ShapeDtypeStruct((16, 128), jnp.float32),
            grid_spec=pltpu.PrefetchScalarGridSpec(
                num_scalar_prefetch=0,
                grid=(2,),
                in_specs=[
                    pl.BlockSpec((8, 128), lambda i: (i, 0)),
                    pl.BlockSpec((8, 128), lambda i: (0, 0),
                                 pipeline_mode=pl.Buffered(1)),
                ],
                out_specs=pl.BlockSpec((8, 128), lambda i: (i, 0)),
            ),
        )
        jax.jit(call).lower(
            jax.ShapeDtypeStruct((16, 128), jnp.float32),
            jax.ShapeDtypeStruct((8, 128), jnp.float32)).compile()
        return True
    except Exception:   # any rejection -> fall back to default double buffering
        return False


# ---------------------------------------------------------------------------
# Kernels
# ---------------------------------------------------------------------------
def _ffn_kernel_resident(x_ref, w1_ref, b1_ref, w2_ref, b2_ref, o_ref):
    # x: (tm, E_pad)  W1: (E_pad, F_pad)  b1: (1, F_pad)
    # W2: (F_pad, E_pad)  b2: (1, E_pad)  o: (tm, E_pad)
    h = jnp.dot(x_ref[...], w1_ref[...], preferred_element_type=jnp.float32)
    h = jnp.maximum(h + b1_ref[...], 0.0)              # bias + ReLU on f32 acc
    out = jnp.dot(h.astype(w2_ref.dtype), w2_ref[...],
                  preferred_element_type=jnp.float32)
    o_ref[...] = (out + b2_ref[...]).astype(o_ref.dtype)


def _ffn_kernel_ftiled(x_ref, w1_ref, b1_ref, w2_ref, b2_ref, o_ref, acc_ref):
    # Reduction over F in slabs of tf; acc_ref is the f32 (tm, E_pad) accumulator.
    f = pl.program_id(1)

    @pl.when(f == 0)
    def _():
        acc_ref[...] = jnp.zeros_like(acc_ref)

    h = jnp.dot(x_ref[...], w1_ref[...], preferred_element_type=jnp.float32)
    h = jnp.maximum(h + b1_ref[...], 0.0)
    acc_ref[...] += jnp.dot(h.astype(w2_ref.dtype), w2_ref[...],
                            preferred_element_type=jnp.float32)

    @pl.when(f == pl.num_programs(1) - 1)
    def _():
        o_ref[...] = (acc_ref[...] + b2_ref[...]).astype(o_ref.dtype)


# ---------------------------------------------------------------------------
# pallas_call wrappers
# ---------------------------------------------------------------------------
@functools.partial(jax.jit,
                   static_argnames=("tm", "single_buffer", "vmem_limit"))
def _ffn_resident(x_p, w1_p, b1_p, w2_p, b2_p, *, tm, single_buffer,
                  vmem_limit):
    M, e_pad = x_p.shape
    f_pad = w1_p.shape[1]
    grid_m = pl.cdiv(M, tm)   # partial last row tile allowed (rows independent)

    def w_spec(shape):
        if single_buffer:
            return pl.BlockSpec(shape, lambda i: (0, 0),
                                pipeline_mode=pl.Buffered(1))
        return pl.BlockSpec(shape, lambda i: (0, 0))

    isz_x = jnp.dtype(x_p.dtype).itemsize
    isz_w = jnp.dtype(w1_p.dtype).itemsize
    cost = pl.CostEstimate(
        flops=4 * M * e_pad * f_pad,
        transcendentals=0,
        bytes_accessed=2 * M * e_pad * isz_x
        + (2 * e_pad * f_pad + e_pad + f_pad) * isz_w)

    return pl.pallas_call(
        _ffn_kernel_resident,
        out_shape=jax.ShapeDtypeStruct((M, e_pad), x_p.dtype),
        grid_spec=pltpu.PrefetchScalarGridSpec(
            num_scalar_prefetch=0,
            grid=(grid_m,),
            in_specs=[
                pl.BlockSpec((tm, e_pad), lambda i: (i, 0)),   # x row tile
                w_spec((e_pad, f_pad)),                        # W1 (resident)
                w_spec((1, f_pad)),                            # b1
                w_spec((f_pad, e_pad)),                        # W2 (resident)
                w_spec((1, e_pad)),                            # b2
            ],
            out_specs=pl.BlockSpec((tm, e_pad), lambda i: (i, 0)),
        ),
        compiler_params=pltpu.CompilerParams(
            dimension_semantics=("parallel",),
            vmem_limit_bytes=vmem_limit),
        cost_estimate=cost,
    )(x_p, w1_p, b1_p, w2_p, b2_p)


@functools.partial(jax.jit, static_argnames=("tm", "tf", "vmem_limit"))
def _ffn_ftiled(x_p, w1_p, b1_p, w2_p, b2_p, *, tm, tf, vmem_limit):
    M, e_pad = x_p.shape
    f_pad = w1_p.shape[1]
    grid_m = pl.cdiv(M, tm)
    grid_f = f_pad // tf

    isz_x = jnp.dtype(x_p.dtype).itemsize
    isz_w = jnp.dtype(w1_p.dtype).itemsize
    cost = pl.CostEstimate(
        flops=4 * M * e_pad * f_pad,
        transcendentals=0,
        bytes_accessed=2 * M * e_pad * isz_x
        + grid_m * (2 * e_pad * f_pad + e_pad + f_pad) * isz_w)

    return pl.pallas_call(
        _ffn_kernel_ftiled,
        out_shape=jax.ShapeDtypeStruct((M, e_pad), x_p.dtype),
        grid_spec=pltpu.PrefetchScalarGridSpec(
            num_scalar_prefetch=0,
            grid=(grid_m, grid_f),
            in_specs=[
                pl.BlockSpec((tm, e_pad), lambda i, f: (i, 0)),  # x (held over f)
                pl.BlockSpec((e_pad, tf), lambda i, f: (0, f)),  # W1 slab
                pl.BlockSpec((1, tf),     lambda i, f: (0, f)),  # b1 slab
                pl.BlockSpec((tf, e_pad), lambda i, f: (f, 0)),  # W2 slab
                pl.BlockSpec((1, e_pad),  lambda i, f: (0, 0)),  # b2
            ],
            out_specs=pl.BlockSpec((tm, e_pad), lambda i, f: (i, 0)),
            scratch_shapes=[pltpu.VMEM((tm, e_pad), jnp.float32)],
        ),
        compiler_params=pltpu.CompilerParams(
            dimension_semantics=("parallel", "arbitrary"),
            vmem_limit_bytes=vmem_limit),
        cost_estimate=cost,
    )(x_p, w1_p, b1_p, w2_p, b2_p)


# ---------------------------------------------------------------------------
# Setup-time parameter prep + forward wrapper
# ---------------------------------------------------------------------------
def prepare_ffn_params(w1, b1, w2, b2):
    """Pad parameters to lane-dense (multiple-of-128) shapes ONCE at setup.

    w1: (E, F), w2: (F, E) — stored pre-transposed as (in, out) relative to
    nn.Linear.weight, so kernels compute plain x @ W (== x @ weight.T).
    Zero padding is mathematically exact (padded x columns meet zero W1 rows,
    padded h columns are relu(0+0)=0 against zero W2 rows).
    """
    E, F = w1.shape
    e_pad = _round_up(max(E, _LANE), _LANE)
    f_pad = _round_up(max(F, _LANE), _LANE)
    w1_p = jnp.pad(w1, ((0, e_pad - E), (0, f_pad - F)))
    b1_p = jnp.pad(b1, (0, f_pad - F)).reshape(1, f_pad)
    w2_p = jnp.pad(w2, ((0, f_pad - F), (0, e_pad - E)))
    b2_p = jnp.pad(b2, (0, e_pad - E)).reshape(1, e_pad)
    return {"w1": w1_p, "b1": b1_p, "w2": w2_p, "b2": b2_p,
            "E": E, "F": F, "e_pad": e_pad, "f_pad": f_pad}


def _pick_tm(M, dtype, budget):
    sublane = 16 if jnp.dtype(dtype) == jnp.bfloat16 else 8
    # Bigger row tiles amortize the ~0.35 us/step pipeline overhead: 512 with
    # v5e/v6e-class VMEM, 256 under v7x's 64 MiB.
    base = 512 if budget >= 96 * _MIB else 256
    # v7x: ensure >= 2 row tiles so ("parallel",) can shard across both TCs.
    ncores = _num_tensorcores()
    if ncores > 1:
        per_core = max(sublane, _round_up(-(-M // ncores), sublane))
        base = min(base, per_core)
    if base >= M:
        return M          # single full-extent row block: no padding, no masking
    return base           # multiple of the sublane packing; last tile partial


def _pick_tf(tm, e_pad, f_pad, isz_w, budget):
    tf = min(f_pad, 2048)
    while tf > _LANE:
        need = (2 * (2 * e_pad * tf + tf + e_pad) * isz_w   # dbl-buffered W/b slabs
                + 4 * tm * e_pad * isz_w                    # dbl-buffered x/out tiles
                + tm * e_pad * 4                            # f32 accumulator scratch
                + tm * tf * 4)                              # f32 intermediate h
        if f_pad % tf == 0 and (need * 3) // 2 <= budget:
            return tf
        tf -= _LANE
    return _LANE


def feed_forward(x, params, *, tm=None, _force_path=None, _force_tf=None):
    """relu(x @ w1 + b1) @ w2 + b2 over the last dim of x (PyTorch FeedForward)."""
    E, e_pad, f_pad = params["E"], params["e_pad"], params["f_pad"]
    orig_shape = x.shape
    x2d = x.reshape(-1, E)
    M = x2d.shape[0]

    budget = _vmem_budget_bytes()
    if tm is None:
        tm = _pick_tm(M, x.dtype, budget)

    # Activation feature padding only when E is not lane-dense
    # (fast path: no pad / slice at all for 128-multiple embeddings).
    x_p = jnp.pad(x2d, ((0, 0), (0, e_pad - E))) if e_pad != E else x2d

    isz_x = jnp.dtype(x.dtype).itemsize
    isz_w = jnp.dtype(params["w1"].dtype).itemsize
    single_buffer = _single_buffer_ok()
    wbufs = 1 if single_buffer else 2
    resident_need = (
        wbufs * (2 * e_pad * f_pad + e_pad + f_pad) * isz_w   # resident W1/W2/b
        + 4 * tm * e_pad * isz_x                              # dbl-buffered x/out tiles
        + tm * f_pad * 4 + tm * e_pad * 4)                    # f32 h + f32 out
    use_resident = (resident_need * 3) // 2 <= budget          # 1.5x slack
    if _force_path == "resident":
        use_resident = True
    elif _force_path == "ftiled":
        use_resident = False

    if use_resident:
        out_p = _ffn_resident(x_p, params["w1"], params["b1"],
                              params["w2"], params["b2"],
                              tm=tm, single_buffer=single_buffer,
                              vmem_limit=budget)
    else:
        tf = _force_tf if _force_tf is not None else _pick_tf(
            tm, e_pad, f_pad, isz_w, budget)
        out_p = _ffn_ftiled(x_p, params["w1"], params["b1"],
                            params["w2"], params["b2"],
                            tm=tm, tf=tf, vmem_limit=budget)

    out2d = out_p[:, :E] if e_pad != E else out_p
    return out2d.reshape(orig_shape)


if __name__ == "__main__":
    # Module hyperparameters (small, consistent with the forward pass).
    embedding_dimension = 32
    feed_forward_dimension = 64
    batch, seq = 2, 8

    key = jax.random.PRNGKey(0)
    k_x, k_w1, k_b1, k_w2, k_b2 = jax.random.split(key, 5)

    x = jax.random.normal(k_x, (batch, seq, embedding_dimension),
                          dtype=jnp.float32)

    # PyTorch-style uniform init (bound 1/sqrt(fan_in)), stored as (in, out).
    bound1 = 1.0 / (embedding_dimension ** 0.5)
    w1 = jax.random.uniform(k_w1, (embedding_dimension, feed_forward_dimension),
                            minval=-bound1, maxval=bound1, dtype=jnp.float32)
    b1 = jax.random.uniform(k_b1, (feed_forward_dimension,),
                            minval=-bound1, maxval=bound1, dtype=jnp.float32)
    bound2 = 1.0 / (feed_forward_dimension ** 0.5)
    w2 = jax.random.uniform(k_w2, (feed_forward_dimension, embedding_dimension),
                            minval=-bound2, maxval=bound2, dtype=jnp.float32)
    b2 = jax.random.uniform(k_b2, (embedding_dimension,),
                            minval=-bound2, maxval=bound2, dtype=jnp.float32)

    # Pad weights ONCE at setup (not per forward call).
    params = prepare_ffn_params(w1, b1, w2, b2)

    out = feed_forward(x, params)
    jax.block_until_ready(out)
    ref = jnp.maximum(x @ w1 + b1, 0.0) @ w2 + b2
    assert out.shape == x.shape
    assert jnp.allclose(out, ref, atol=1e-5, rtol=1e-5)

    # Ragged row count (batch*seq not a tile/sublane multiple): handled by a
    # full-extent / partial row block, no activation row padding.
    x_odd = jax.random.normal(k_x, (3, 5, embedding_dimension),
                              dtype=jnp.float32)
    out_odd = feed_forward(x_odd, params)
    jax.block_until_ready(out_odd)
    ref_odd = jnp.maximum(x_odd @ w1 + b1, 0.0) @ w2 + b2
    assert out_odd.shape == x_odd.shape
    assert jnp.allclose(out_odd, ref_odd, atol=1e-5, rtol=1e-5)

    # Validate the F-tiled (streamed-weight, f32-accumulator) path that is used
    # for large FFNs, forcing a 2-step reduction over F.
    F2 = 256
    k_w1b, k_b1b, k_w2b, k_b2b = jax.random.split(k_w2, 4)
    w1b = jax.random.uniform(k_w1b, (embedding_dimension, F2),
                             minval=-bound1, maxval=bound1, dtype=jnp.float32)
    b1b = jax.random.uniform(k_b1b, (F2,),
                             minval=-bound1, maxval=bound1, dtype=jnp.float32)
    bound2b = 1.0 / (F2 ** 0.5)
    w2b = jax.random.uniform(k_w2b, (F2, embedding_dimension),
                             minval=-bound2b, maxval=bound2b, dtype=jnp.float32)
    b2b = jax.random.uniform(k_b2b, (embedding_dimension,),
                             minval=-bound2b, maxval=bound2b, dtype=jnp.float32)
    params_b = prepare_ffn_params(w1b, b1b, w2b, b2b)
    out_b = feed_forward(x, params_b, _force_path="ftiled", _force_tf=128)
    jax.block_until_ready(out_b)
    ref_b = jnp.maximum(x @ w1b + b1b, 0.0) @ w2b + b2b
    assert jnp.allclose(out_b, ref_b, atol=1e-5, rtol=1e-5)

    print("KERNEL_OK")
</pallas_src>

<mosaic_0001>
module attributes {stable_mosaic.version = 11 : i64} {
  func.func @_ffn_kernel_resident(%arg0: i32, %arg1: memref<16x128xf32, #tpu.memory_space<vmem>>, %arg2: memref<128x128xf32, #tpu.memory_space<vmem>>, %arg3: memref<1x128xf32, #tpu.memory_space<vmem>>, %arg4: memref<128x128xf32, #tpu.memory_space<vmem>>, %arg5: memref<1x128xf32, #tpu.memory_space<vmem>>, %arg6: memref<16x128xf32, #tpu.memory_space<vmem>>) attributes {dimension_semantics = [#tpu.dimension_semantics<parallel>], iteration_bounds = array<i64: 1>, scalar_prefetch = 0 : i64, scratch_operands = 0 : i64, tpu.core_type = #tpu.core_type<tc>, window_params = [{transform_indices = @transform_0, window_bounds = array<i64: 16, 128>}, {pipeline_mode = #tpu.pipeline_mode<synchronous>, transform_indices = @transform_1, window_bounds = array<i64: 128, 128>}, {pipeline_mode = #tpu.pipeline_mode<synchronous>, transform_indices = @transform_2, window_bounds = array<i64: 1, 128>}, {pipeline_mode = #tpu.pipeline_mode<synchronous>, transform_indices = @transform_3, window_bounds = array<i64: 128, 128>}, {pipeline_mode = #tpu.pipeline_mode<synchronous>, transform_indices = @transform_4, window_bounds = array<i64: 1, 128>}, {transform_indices = @transform_5, window_bounds = array<i64: 16, 128>}]} {
    %c0 = arith.constant 0 : index
    %c0_0 = arith.constant 0 : index
    %0 = vector.load %arg1[%c0, %c0_0] : memref<16x128xf32, #tpu.memory_space<vmem>>, vector<16x128xf32>
    %c0_1 = arith.constant 0 : index
    %c0_2 = arith.constant 0 : index
    %1 = vector.load %arg2[%c0_1, %c0_2] : memref<128x128xf32, #tpu.memory_space<vmem>>, vector<128x128xf32>
    %cst = arith.constant dense<0.000000e+00> : vector<16x128xf32>
    %2 = tpu.matmul %0, %1, %cst {dimension_numbers = #tpu.dot_dimension_numbers<[1], [0], [0], [1], [0, 0, 1, 1], [], []>} : vector<16x128xf32>, vector<128x128xf32>, vector<16x128xf32> -> vector<16x128xf32>
    %c0_3 = arith.constant 0 : index
    %c0_4 = arith.constant 0 : index
    %3 = vector.load %arg3[%c0_3, %c0_4] : memref<1x128xf32, #tpu.memory_space<vmem>>, vector<1x128xf32>
    %4 = vector.broadcast %3 : vector<1x128xf32> to vector<16x128xf32>
    %5 = arith.addf %2, %4 : vector<16x128xf32>
    %cst_5 = arith.constant 0.000000e+00 : f32
    %6 = vector.broadcast %cst_5 : f32 to vector<16x128xf32>
    %7 = arith.maximumf %5, %6 : vector<16x128xf32>
    %c0_6 = arith.constant 0 : index
    %c0_7 = arith.constant 0 : index
    %8 = vector.load %arg4[%c0_6, %c0_7] : memref<128x128xf32, #tpu.memory_space<vmem>>, vector<128x128xf32>
    %cst_8 = arith.constant dense<0.000000e+00> : vector<16x128xf32>
    %9 = tpu.matmul %7, %8, %cst_8 {dimension_numbers = #tpu.dot_dimension_numbers<[1], [0], [0], [1], [0, 0, 1, 1], [], []>} : vector<16x128xf32>, vector<128x128xf32>, vector<16x128xf32> -> vector<16x128xf32>
    %c0_9 = arith.constant 0 : index
    %c0_10 = arith.constant 0 : index
    %10 = vector.load %arg5[%c0_9, %c0_10] : memref<1x128xf32, #tpu.memory_space<vmem>>, vector<1x128xf32>
    %11 = vector.broadcast %10 : vector<1x128xf32> to vector<16x128xf32>
    %12 = arith.addf %9, %11 : vector<16x128xf32>
    %c0_11 = arith.constant 0 : index
    %c0_12 = arith.constant 0 : index
    %13 = vector.load %arg6[%c0_11, %c0_12] : memref<16x128xf32, #tpu.memory_space<vmem>>, vector<16x128xf32>
    tpu.vector_store %arg6[%c0_11, %c0_12], %12 {strides = array<i32>} : memref<16x128xf32, #tpu.memory_space<vmem>>, vector<16x128xf32>,
    return
  }
  func.func @transform_0(%arg0: i32) -> (i32, i32) {
    %c0_i32 = arith.constant 0 : i32
    %c0_i32_0 = arith.constant 0 : i32
    return %arg0, %c0_i32 : i32, i32
  }
  func.func @transform_1(%arg0: i32) -> (i32, i32) {
    %c0_i32 = arith.constant 0 : i32
    %c0_i32_0 = arith.constant 0 : i32
    %c0_i32_1 = arith.constant 0 : i32
    return %c0_i32, %c0_i32_0 : i32, i32
  }
  func.func @transform_2(%arg0: i32) -> (i32, i32) {
    %c0_i32 = arith.constant 0 : i32
    %c0_i32_0 = arith.constant 0 : i32
    %c0_i32_1 = arith.constant 0 : i32
    return %c0_i32, %c0_i32_0 : i32, i32
  }
  func.func @transform_3(%arg0: i32) -> (i32, i32) {
    %c0_i32 = arith.constant 0 : i32
    %c0_i32_0 = arith.constant 0 : i32
    %c0_i32_1 = arith.constant 0 : i32
    return %c0_i32, %c0_i32_0 : i32, i32
  }
  func.func @transform_4(%arg0: i32) -> (i32, i32) {
    %c0_i32 = arith.constant 0 : i32
    %c0_i32_0 = arith.constant 0 : i32
    %c0_i32_1 = arith.constant 0 : i32
    return %c0_i32, %c0_i32_0 : i32, i32
  }
  func.func @transform_5(%arg0: i32) -> (i32, i32) {
    %c0_i32 = arith.constant 0 : i32
    %c0_i32_0 = arith.constant 0 : i32
    return %arg0, %c0_i32 : i32, i32
  }
}

</mosaic_0001>

<llo_original>
// kernel: _ffn_resident.1
$region0: #{_ffn_resident.1}
  #allocation0 [shape = 'u32[]', space=smem, size = 0x4, offset = 0x4, fixed_abs, tag = 'smem constant byte address 0x4 - core index']
  #allocation1 [shape = 'u32[144,128]{1,0:T(1,128)}', space=vmem, size = 0x12000, scoped, tag = 'internal scratch']
  %s0 = inlined_call_operand.hbm [shape: f32[16,128], index: 0, kind: input, shape index: {}]
  %s1 = inlined_call_operand.hbm [shape: f32[128,128], index: 1, kind: input, shape index: {}]
  %s2 = inlined_call_operand.hbm [shape: f32[1,128], index: 2, kind: input, shape index: {}]
  %s3 = inlined_call_operand.hbm [shape: f32[128,128], index: 3, kind: input, shape index: {}]
  %s4 = inlined_call_operand.hbm [shape: f32[1,128], index: 4, kind: input, shape index: {}]
  %s5 = inlined_call_operand.hbm [shape: f32[16,128], index: 5, kind: output, shape index: {}]
  %s6 = sld [smem:[#allocation0]]
  $region50: #{_ffn_resident.1} parent=0
    _
  %s8 = ssub.s32 1, %s6
  %s9 = scalar_select 0, %s8, %s6
  $region1: #{_ffn_resident.1} parent=0
    #allocation2 [shape = 'u8[8192]{0}', space=vmem, size = 0x2000, scoped, tag = 'input window, operand 0, single buffered']
    #allocation3 [shape = 's32[1]{0}', space=sflag, size = 0x4, scoped, tag = 'scoped memory for _ffn_resident.1']
    #allocation4 [shape = 's32[1]{0}', space=sflag, size = 0x4, scoped, tag = 'scoped memory for _ffn_resident.1']
    #allocation5 [shape = 'u8[65536]{0}', space=vmem, size = 0x10000, scoped, tag = 'input window, operand 1, single buffered']
    #allocation6 [shape = 's32[1]{0}', space=sflag, size = 0x4, scoped, tag = 'scoped memory for _ffn_resident.1']
    #allocation7 [shape = 'u8[512]{0}', space=vmem, size = 0x400, scoped, tag = 'input window, operand 2, single buffered']
    #allocation8 [shape = 'u8[65536]{0}', space=vmem, size = 0x10000, scoped, tag = 'input window, operand 3, single buffered']
    #allocation9 [shape = 's32[1]{0}', space=sflag, size = 0x4, scoped, tag = 'scoped memory for _ffn_resident.1']
    #allocation10 [shape = 'u8[512]{0}', space=vmem, size = 0x400, scoped, tag = 'input window, operand 4, single buffered']
    #allocation11 [shape = 'u8[8192]{0}', space=vmem, size = 0x2000, scoped, tag = 'output window, operand 0, single buffered']
    %10 = vsyncpa [#allocation3], 0
    %11 = vsyncpa [#allocation6], 0
    %12 = vsyncpa [#allocation9], 0
    %13 = vsyncpa [#allocation4], 0
    // Predicated region
    $region2: #{_ffn_resident.1} parent=1 // pred_check
      _
    $region3: #{_ffn_resident.1} parent=1 // pred_check_branch
      %15 = sbr.rel (0) target = $region5
    $region4: #{_ffn_resident.1} parent=1 // pred_region
      %s17 = ssub.s32 256, 256
      %18 = vsyncadd [#allocation3], %s17
      %s19 = sshll.u32 [#allocation2], 4
      %s20 = int_to_ptr.vmem [resolvable:$true] %s19
      %25 = dma.hbm_to_vmem [thread:$0]  %s0, 256, %s20, [#allocation3], 128, 128, 8
    $region5: #{_ffn_resident.1} parent=1 // pred_fallthru
      _
    // Predicated region
    $region6: #{_ffn_resident.1} parent=1 // pred_check
      _
    $region7: #{_ffn_resident.1} parent=1 // pred_check_branch
      %27 = sbr.rel (0) target = $region9
    $region8: #{_ffn_resident.1} parent=1 // pred_region
      %s29 = ssub.s32 2048, 2048
      %30 = vsyncadd [#allocation6], %s29
      %s31 = sshll.u32 [#allocation5], 4
      %s32 = int_to_ptr.vmem [resolvable:$true] %s31
      %37 = dma.hbm_to_vmem [thread:$0]  %s1, 2048, %s32, [#allocation6], 128, 128, 8
    $region9: #{_ffn_resident.1} parent=1 // pred_fallthru
      _
    // Predicated region
    $region10: #{_ffn_resident.1} parent=1 // pred_check
      _
    $region11: #{_ffn_resident.1} parent=1 // pred_check_branch
      %39 = sbr.rel (0) target = $region13
    $region12: #{_ffn_resident.1} parent=1 // pred_region
      %s41 = ssub.s32 16, 16
      %42 = vsyncadd [#allocation6], %s41
      %s44 = sshll.u32 [#allocation7], 4
      %s45 = int_to_ptr.vmem [resolvable:$true] %s44
      %47 = dma.hbm_to_vmem [thread:$0]  %s2, 16, %s45, [#allocation6]
    $region13: #{_ffn_resident.1} parent=1 // pred_fallthru
      _
    // Predicated region
    $region14: #{_ffn_resident.1} parent=1 // pred_check
      _
    $region15: #{_ffn_resident.1} parent=1 // pred_check_branch
      %49 = sbr.rel (0) target = $region17
    $region16: #{_ffn_resident.1} parent=1 // pred_region
      %s51 = ssub.s32 2048, 2048
      %52 = vsyncadd [#allocation9], %s51
      %s53 = sshll.u32 [#allocation8], 4
      %s54 = int_to_ptr.vmem [resolvable:$true] %s53
      %59 = dma.hbm_to_vmem [thread:$0]  %s3, 2048, %s54, [#allocation9], 128, 128, 8
    $region17: #{_ffn_resident.1} parent=1 // pred_fallthru
      _
    // Predicated region
    $region18: #{_ffn_resident.1} parent=1 // pred_check
      _
    $region19: #{_ffn_resident.1} parent=1 // pred_check_branch
      %61 = sbr.rel (0) target = $region21
    $region20: #{_ffn_resident.1} parent=1 // pred_region
      %s63 = ssub.s32 16, 16
      %64 = vsyncadd [#allocation9], %s63
      %s66 = sshll.u32 [#allocation10], 4
      %s67 = int_to_ptr.vmem [resolvable:$true] %s66
      %69 = dma.hbm_to_vmem [thread:$0]  %s4, 16, %s67, [#allocation9]
    $region21: #{_ffn_resident.1} parent=1 // pred_fallthru
      _
    // Predicated region
    $region22: #{_ffn_resident.1} parent=1 // pred_check
      _
    $region23: #{_ffn_resident.1} parent=1 // pred_check_branch
      %71 = sbr.rel (0) target = $region25
    $region24: #{_ffn_resident.1} parent=1 // pred_region
      %72 = dma.done [#allocation3], 256
    $region25: #{_ffn_resident.1} parent=1 // pred_fallthru
      _
    // Predicated region
    $region26: #{_ffn_resident.1} parent=1 // pred_check
      _
    $region27: #{_ffn_resident.1} parent=1 // pred_check_branch
      %74 = sbr.rel (0) target = $region29
    $region28: #{_ffn_resident.1} parent=1 // pred_region
      %75 = dma.done [#allocation6], 2048
    $region29: #{_ffn_resident.1} parent=1 // pred_fallthru
      _
    // Predicated region
    $region30: #{_ffn_resident.1} parent=1 // pred_check
      _
    $region31: #{_ffn_resident.1} parent=1 // pred_check_branch
      %77 = sbr.rel (0) target = $region33
    $region32: #{_ffn_resident.1} parent=1 // pred_region
      %78 = dma.done [#allocation6], 16
    $region33: #{_ffn_resident.1} parent=1 // pred_fallthru
      _
    // Predicated region
    $region34: #{_ffn_resident.1} parent=1 // pred_check
      _
    $region35: #{_ffn_resident.1} parent=1 // pred_check_branch
      %80 = sbr.rel (0) target = $region37
    $region36: #{_ffn_resident.1} parent=1 // pred_region
      %81 = dma.done [#allocation9], 2048
    $region37: #{_ffn_resident.1} parent=1 // pred_fallthru
      _
    // Predicated region
    $region38: #{_ffn_resident.1} parent=1 // pred_check
      _
    $region39: #{_ffn_resident.1} parent=1 // pred_check_branch
      %83 = sbr.rel (0) target = $region41
    $region40: #{_ffn_resident.1} parent=1 // pred_region
      %84 = dma.done [#allocation9], 16
    $region41: #{_ffn_resident.1} parent=1 // pred_fallthru
      _
    %v85 = vld [vmem:[#allocation2] sm:$0xff]
    %v86 = vld [vmem:[#allocation2 + $0x8] sm:$0xff]
    %v87 = vld [vmem:[#allocation5] sm:$0xff]
    %v88 = vld [vmem:[#allocation5 + $0x8] sm:$0xff]
    %v89 = vld [vmem:[#allocation5 + $0x10] sm:$0xff]
    %v90 = vld [vmem:[#allocation5 + $0x18] sm:$0xff]
    %v91 = vld [vmem:[#allocation5 + $0x20] sm:$0xff]
    %v92 = vld [vmem:[#allocation5 + $0x28] sm:$0xff]
    %v93 = vld [vmem:[#allocation5 + $0x30] sm:$0xff]
    %v94 = vld [vmem:[#allocation5 + $0x38] sm:$0xff]
    %v95 = vld [vmem:[#allocation5 + $0x40] sm:$0xff]
    %v96 = vld [vmem:[#allocation5 + $0x48] sm:$0xff]
    %v97 = vld [vmem:[#allocation5 + $0x50] sm:$0xff]
    %v98 = vld [vmem:[#allocation5 + $0x58] sm:$0xff]
    %v99 = vld [vmem:[#allocation5 + $0x60] sm:$0xff]
    %v100 = vld [vmem:[#allocation5 + $0x68] sm:$0xff]
    %v101 = vld [vmem:[#allocation5 + $0x70] sm:$0xff]
    %v102 = vld [vmem:[#allocation5 + $0x78] sm:$0xff]
    %v103 = vld [vmem:[#allocation7] sm:$0x1]
    %v105 = vlaneseq
    %v106 = vshrl.u32 %v105, 7
    %v107 = vsub.s32 0, %v106
    %v108 = vrot.slane %v103, %v107
    %110 = vmatprep.subr.mxu0 0.0
    %111 = vmatpush1.msra.mxu0 %v87
    %112 = vmatprep.subr.mxu0 0.0
    %113 = vmatpush1.msra.mxu0 %v88
    %114 = vmatprep.subr.mxu0 0.0
    %115 = vmatpush1.msra.mxu0 %v89
    %116 = vmatprep.subr.mxu0 0.0
    %117 = vmatpush1.msra.mxu0 %v90
    %118 = vmatprep.subr.mxu0 0.0
    %119 = vmatpush1.msra.mxu0 %v91
    %120 = vmatprep.subr.mxu0 0.0
    %121 = vmatpush1.msra.mxu0 %v92
    %122 = vmatprep.subr.mxu0 0.0
    %123 = vmatpush1.msra.mxu0 %v93
    %124 = vmatprep.subr.mxu0 0.0
    %125 = vmatpush1.msra.mxu0 %v94
    %126 = vmatprep.subr.mxu0 0.0
    %127 = vmatpush1.msra.mxu0 %v95
    %128 = vmatprep.subr.mxu0 0.0
    %129 = vmatpush1.msra.mxu0 %v96
    %130 = vmatprep.subr.mxu0 0.0
    %131 = vmatpush1.msra.mxu0 %v97
    %132 = vmatprep.subr.mxu0 0.0
    %133 = vmatpush1.msra.mxu0 %v98
    %134 = vmatprep.subr.mxu0 0.0
    %135 = vmatpush1.msra.mxu0 %v99
    %136 = vmatprep.subr.mxu0 0.0
    %137 = vmatpush1.msra.mxu0 %v100
    %138 = vmatprep.subr.mxu0 0.0
    %139 = vmatpush1.msra.mxu0 %v101
    %140 = vmatprep.subr.mxu0 0.0
    %141 = vmatpush1.msra.mxu0 %v102
    %142 = vmatprep.subr.mxu0 0.0
    %143 = vmatpush1.msra.mxu0 0.0
    %144 = vmatprep.subr.mxu0 0.0
    %145 = vmatpush1.msra.mxu0 0.0
    %146 = vmatprep.subr.mxu0 0.0
    %147 = vmatpush1.msra.mxu0 0.0
    %148 = vmatprep.subr.mxu0 0.0
    %149 = vmatpush1.msra.mxu0 0.0
    %150 = vmatprep.subr.mxu0 0.0
    %151 = vmatpush1.msra.mxu0 0.0
    %152 = vmatprep.subr.mxu0 0.0
    %153 = vmatpush1.msra.mxu0 0.0
    %154 = vmatprep.subr.mxu0 0.0
    %155 = vmatpush1.msra.mxu0 0.0
    %156 = vmatprep.subr.mxu0 0.0
    %157 = vmatpush1.msra.mxu0 0.0
    %158 = vmatprep.subr.mxu0 0.0
    %159 = vmatpush1.msra.mxu0 0.0
    %160 = vmatprep.subr.mxu0 0.0
    %161 = vmatpush1.msra.mxu0 0.0
    %162 = vmatprep.subr.mxu0 0.0
    %163 = vmatpush1.msra.mxu0 0.0
    %164 = vmatprep.subr.mxu0 0.0
    %165 = vmatpush1.msra.mxu0 0.0
    %166 = vmatprep.subr.mxu0 0.0
    %167 = vmatpush1.msra.mxu0 0.0
    %168 = vmatprep.subr.mxu0 0.0
    %169 = vmatpush1.msra.mxu0 0.0
    %170 = vmatprep.subr.mxu0 0.0
    %171 = vmatpush1.msra.mxu0 0.0
    %172 = vmatprep.subr.mxu0 0.0
    %173 = vmatpush1.msra.mxu0 0.0
    %174 = vmatprep.mubr.f32.mxu0 0.0
    %175 = vmatmul.mubr.f32.gmra.mrb[0].mxu0 %v85
    %v176 = vpop.f32.mrb[0].mxu0
    %v177 = vadd.f32 %v108, %v176
    %v178 = vpop.f32.mrb[0].mxu0
    %179 = vmatprep.mubr.f32.mxu0 0.0
    %180 = vmatmul.mubr.f32.gmra.mrb[0].mxu0 %v86
    %v181 = vpop.f32.mrb[0].mxu0
    %v182 = vadd.f32 %v108, %v181
    %v183 = vpop.f32.mrb[0].mxu0
    %184 = vdwg.mxu0
    %v185 = vmax.f32 %v177, 0.0
    %v186 = vmax.f32 %v182, 0.0
    %v187 = vld [vmem:[#allocation8] sm:$0xff]
    %v188 = vld [vmem:[#allocation8 + $0x8] sm:$0xff]
    %v189 = vld [vmem:[#allocation8 + $0x10] sm:$0xff]
    %v190 = vld [vmem:[#allocation8 + $0x18] sm:$0xff]
    %v191 = vld [vmem:[#allocation8 + $0x20] sm:$0xff]
    %v192 = vld [vmem:[#allocation8 + $0x28] sm:$0xff]
    %v193 = vld [vmem:[#allocation8 + $0x30] sm:$0xff]
    %v194 = vld [vmem:[#allocation8 + $0x38] sm:$0xff]
    %v195 = vld [vmem:[#allocation8 + $0x40] sm:$0xff]
    %v196 = vld [vmem:[#allocation8 + $0x48] sm:$0xff]
    %v197 = vld [vmem:[#allocation8 + $0x50] sm:$0xff]
    %v198 = vld [vmem:[#allocation8 + $0x58] sm:$0xff]
    %v199 = vld [vmem:[#allocation8 + $0x60] sm:$0xff]
    %v200 = vld [vmem:[#allocation8 + $0x68] sm:$0xff]
    %v201 = vld [vmem:[#allocation8 + $0x70] sm:$0xff]
    %v202 = vld [vmem:[#allocation8 + $0x78] sm:$0xff]
    %v203 = vld [vmem:[#allocation10] sm:$0x1]
    %v205 = vlaneseq
    %v206 = vshrl.u32 %v205, 7
    %v207 = vsub.s32 0, %v206
    %v208 = vrot.slane %v203, %v207
    %210 = vmatprep.subr.mxu0 0.0
    %211 = vmatpush1.msra.mxu0 %v187
    %212 = vmatprep.subr.mxu0 0.0
    %213 = vmatpush1.msra.mxu0 %v188
    %214 = vmatprep.subr.mxu0 0.0
    %215 = vmatpush1.msra.mxu0 %v189
    %216 = vmatprep.subr.mxu0 0.0
    %217 = vmatpush1.msra.mxu0 %v190
    %218 = vmatprep.subr.mxu0 0.0
    %219 = vmatpush1.msra.mxu0 %v191
    %220 = vmatprep.subr.mxu0 0.0
    %221 = vmatpush1.msra.mxu0 %v192
    %222 = vmatprep.subr.mxu0 0.0
    %223 = vmatpush1.msra.mxu0 %v193
    %224 = vmatprep.subr.mxu0 0.0
    %225 = vmatpush1.msra.mxu0 %v194
    %226 = vmatprep.subr.mxu0 0.0
    %227 = vmatpush1.msra.mxu0 %v195
    %228 = vmatprep.subr.mxu0 0.0
    %229 = vmatpush1.msra.mxu0 %v196
    %230 = vmatprep.subr.mxu0 0.0
    %231 = vmatpush1.msra.mxu0 %v197
    %232 = vmatprep.subr.mxu0 0.0
    %233 = vmatpush1.msra.mxu0 %v198
    %234 = vmatprep.subr.mxu0 0.0
    %235 = vmatpush1.msra.mxu0 %v199
    %236 = vmatprep.subr.mxu0 0.0
    %237 = vmatpush1.msra.mxu0 %v200
    %238 = vmatprep.subr.mxu0 0.0
    %239 = vmatpush1.msra.mxu0 %v201
    %240 = vmatprep.subr.mxu0 0.0
    %241 = vmatpush1.msra.mxu0 %v202
    %242 = vmatprep.subr.mxu0 0.0
    %243 = vmatpush1.msra.mxu0 0.0
    %244 = vmatprep.subr.mxu0 0.0
    %245 = vmatpush1.msra.mxu0 0.0
    %246 = vmatprep.subr.mxu0 0.0
    %247 = vmatpush1.msra.mxu0 0.0
    %248 = vmatprep.subr.mxu0 0.0
    %249 = vmatpush1.msra.mxu0 0.0
    %250 = vmatprep.subr.mxu0 0.0
    %251 = vmatpush1.msra.mxu0 0.0
    %252 = vmatprep.subr.mxu0 0.0
    %253 = vmatpush1.msra.mxu0 0.0
    %254 = vmatprep.subr.mxu0 0.0
    %255 = vmatpush1.msra.mxu0 0.0
    %256 = vmatprep.subr.mxu0 0.0
    %257 = vmatpush1.msra.mxu0 0.0
    %258 = vmatprep.subr.mxu0 0.0
    %259 = vmatpush1.msra.mxu0 0.0
    %260 = vmatprep.subr.mxu0 0.0
    %261 = vmatpush1.msra.mxu0 0.0
    %262 = vmatprep.subr.mxu0 0.0
    %263 = vmatpush1.msra.mxu0 0.0
    %264 = vmatprep.subr.mxu0 0.0
    %265 = vmatpush1.msra.mxu0 0.0
    %266 = vmatprep.subr.mxu0 0.0
    %267 = vmatpush1.msra.mxu0 0.0
    %268 = vmatprep.subr.mxu0 0.0
    %269 = vmatpush1.msra.mxu0 0.0
    %270 = vmatprep.subr.mxu0 0.0
    %271 = vmatpush1.msra.mxu0 0.0
    %272 = vmatprep.subr.mxu0 0.0
    %273 = vmatpush1.msra.mxu0 0.0
    %274 = vmatprep.mubr.f32.mxu0 0.0
    %275 = vmatmul.mubr.f32.gmra.mrb[0].mxu0 %v185
    %v276 = vpop.f32.mrb[0].mxu0
    %v277 = vadd.f32 %v208, %v276
    %v278 = vpop.f32.mrb[0].mxu0
    %279 = vmatprep.mubr.f32.mxu0 0.0
    %280 = vmatmul.mubr.f32.gmra.mrb[0].mxu0 %v186
    %v281 = vpop.f32.mrb[0].mxu0
    %v282 = vadd.f32 %v208, %v281
    %v283 = vpop.f32.mrb[0].mxu0
    %284 = vdwg.mxu0
    %285 = vst [vmem:[#allocation11] sm:$0xff] %v277
    %286 = vst [vmem:[#allocation11 + $0x8] sm:$0xff] %v282
    // Predicated region
    $region42: #{_ffn_resident.1} parent=1 // pred_check
      _
    $region43: #{_ffn_resident.1} parent=1 // pred_check_branch
      %288 = sbr.rel (0) target = $region45
    $region44: #{_ffn_resident.1} parent=1 // pred_region
      %s290 = ssub.s32 256, 256
      %291 = vsyncadd [#allocation4], %s290
      %s292 = sshll.u32 [#allocation11], 4
      %s293 = int_to_ptr.vmem [resolvable:$true] %s292
      %298 = dma.vmem_to_hbm [thread:$0]  %s293, 256, %s5, [#allocation4], 128, 128, 8
    $region45: #{_ffn_resident.1} parent=1 // pred_fallthru
      _
    // Predicated region
    $region46: #{_ffn_resident.1} parent=1 // pred_check
      _
    $region47: #{_ffn_resident.1} parent=1 // pred_check_branch
      %300 = sbr.rel (0) target = $region49
    $region48: #{_ffn_resident.1} parent=1 // pred_region
      %301 = dma.done [#allocation4], 256
    $region49: #{_ffn_resident.1} parent=1 // pred_fallthru
      _
    %302 = vsyncpa [#allocation3], 1
    %303 = vsyncpa [#allocation6], 1
    %304 = vsyncpa [#allocation9], 1
    %305 = vsyncpa [#allocation4], 1

</llo_original>
